<compile_context>
chip_gen: v5e
topology: v5e:2x2
jax: 0.10.0
libtpu: 0.0.40
codegen_flags: <defaults>
</compile_context>

<pallas_src>
import functools

import jax
import jax.numpy as jnp
from jax.experimental import pallas as pl
from jax.experimental.pallas import tpu as pltpu

_LANE = 128
_SUBLANE = 8
_VMEM_BUDGET = 48 * 1024 * 1024  # headroom under v7x's 64 MiB per-TC VMEM
_MAX_BLOCK_M = 1024              # cap on the batch tile


def _round_up(n, m):
    return ((n + m - 1) // m) * m


def _mlp_kernel(x_ref,
                w1_ref, b1_ref,
                w2_ref, b2_ref,
                w3_ref, b3_ref,
                w4_ref, b4_ref,
                o_ref):
    """Whole forward pass (4 matmuls + activations) fused in one kernel body."""
    x = x_ref[...]                      # (bm, in_p), compute dtype (bf16/f32)
    cdt = x.dtype

    # encoder
    h = jnp.dot(x, w1_ref[...], preferred_element_type=jnp.float32) + b1_ref[...]
    h = jnp.maximum(h, 0.0).astype(cdt)                       # ReLU
    h = jnp.dot(h, w2_ref[...], preferred_element_type=jnp.float32) + b2_ref[...]
    h = jnp.maximum(h, 0.0).astype(cdt)                       # ReLU

    # decoder
    h = jnp.dot(h, w3_ref[...], preferred_element_type=jnp.float32) + b3_ref[...]
    h = jnp.maximum(h, 0.0).astype(cdt)                       # ReLU
    logits = jnp.dot(h, w4_ref[...], preferred_element_type=jnp.float32) + b4_ref[...]

    # sigmoid: exp on the EUP, reciprocal on the EUP (approx vrcp) -> VALU free
    denom = 1.0 + jnp.exp(-logits)
    o_ref[...] = pl.reciprocal(denom, approx=True).astype(o_ref.dtype)


@functools.partial(jax.jit, static_argnames=("block_m", "compute_dtype"))
def baseline_forward(x, params, block_m=None, compute_dtype=jnp.bfloat16):
    """x: (B, input_dim) float32. params: (in,out) weights + (1,out) biases."""
    B, input_dim = x.shape
    hidden_dim = params["w1"].shape[1]
    output_dim = params["w4"].shape[1]

    in_p = _round_up(input_dim, _LANE)
    hid_p = _round_up(hidden_dim, _LANE)
    out_p = _round_up(output_dim, _LANE)

    cdt = jnp.dtype(compute_dtype)
    cbytes = cdt.itemsize

    # Static VMEM footprint of the resident (single-buffered) weights/biases.
    weight_bytes = (in_p * hid_p + 2 * hid_p * hid_p + hid_p * out_p) * cbytes
    bias_bytes = (3 * hid_p + out_p) * 4

    if block_m is None:
        # Auto-size the batch tile: largest multiple of 8 whose double-buffered
        # x/out tiles + ~3 live f32 hidden activations fit the remaining budget.
        per_row = 2 * (in_p * cbytes + out_p * 4) + 3 * hid_p * 4
        remaining = _VMEM_BUDGET - weight_bytes - bias_bytes
        assert remaining > per_row * _SUBLANE, (
            "resident weights exceed VMEM budget; tile the hidden dimension")
        block_m = max(_SUBLANE, min(_MAX_BLOCK_M,
                                    (remaining // per_row) // _SUBLANE * _SUBLANE))

    # Never pad the batch beyond one (sublane-padded) tile.
    bm = max(_SUBLANE, min(block_m, _round_up(B, _SUBLANE)))
    b_p = _round_up(B, bm)

    def pad2(a, rows, cols):
        return jnp.pad(a, ((0, rows - a.shape[0]), (0, cols - a.shape[1])))

    x_p = pad2(x, b_p, in_p).astype(cdt)
    w1 = pad2(params["w1"], in_p, hid_p).astype(cdt)
    w2 = pad2(params["w2"], hid_p, hid_p).astype(cdt)
    w3 = pad2(params["w3"], hid_p, hid_p).astype(cdt)
    w4 = pad2(params["w4"], hid_p, out_p).astype(cdt)
    b1 = pad2(params["b1"], 1, hid_p)   # biases stay f32 (added post-accum)
    b2 = pad2(params["b2"], 1, hid_p)
    b3 = pad2(params["b3"], 1, hid_p)
    b4 = pad2(params["b4"], 1, out_p)

    io_bytes = 2 * bm * (in_p * cbytes + out_p * 4)
    total_vmem = weight_bytes + bias_bytes + io_bytes + 3 * bm * hid_p * 4
    assert total_vmem <= _VMEM_BUDGET, (
        "resident weights + tiles exceed VMEM budget; reduce block_m or tile "
        f"the hidden dimension (need {total_vmem} bytes)")
    # TODO(synk): for hidden dims that blow this budget, add a K/N grid axis
    # over the hidden*hidden weights instead of keeping them fully resident.

    resident = pl.BlockSpec(memory_space=pltpu.MemorySpace.VMEM)  # no double-buffer
    row = lambda i: (i, 0)                                        # tile over batch rows

    grid_spec = pltpu.PrefetchScalarGridSpec(
        num_scalar_prefetch=0,
        grid=(b_p // bm,),
        in_specs=[
            pl.BlockSpec((bm, in_p), row),
            resident, resident,   # w1, b1
            resident, resident,   # w2, b2
            resident, resident,   # w3, b3
            resident, resident,   # w4, b4
        ],
        out_specs=pl.BlockSpec((bm, out_p), row),
    )

    out = pl.pallas_call(
        _mlp_kernel,
        out_shape=jax.ShapeDtypeStruct((b_p, out_p), jnp.float32),
        grid_spec=grid_spec,
        compiler_params=pltpu.CompilerParams(
            dimension_semantics=("parallel",),
            vmem_limit_bytes=_VMEM_BUDGET,
        ),
    )(x_p, w1, b1, w2, b2, w3, b3, w4, b4)

    return out[:B, :output_dim]


def init_params(key, input_dim, hidden_dim, output_dim):
    """Deterministic synthetic parameters (PyTorch-style init). Weights stored (in, out)."""
    ks = jax.random.split(key, 8)

    def lin(kw, kb, fan_in, fan_out):
        bound = 1.0 / jnp.sqrt(fan_in)
        w = jax.random.uniform(kw, (fan_in, fan_out), jnp.float32, -bound, bound)
        b = jax.random.uniform(kb, (1, fan_out), jnp.float32, -bound, bound)
        return w, b

    w1, b1 = lin(ks[0], ks[1], input_dim, hidden_dim)
    w2, b2 = lin(ks[2], ks[3], hidden_dim, hidden_dim)
    w3, b3 = lin(ks[4], ks[5], hidden_dim, hidden_dim)
    w4, b4 = lin(ks[6], ks[7], hidden_dim, output_dim)
    return dict(w1=w1, b1=b1, w2=w2, b2=b2, w3=w3, b3=b3, w4=w4, b4=b4)


def baseline_ref(x, p, compute_dtype=jnp.float32):
    """Pure-JAX reference matching the PyTorch forward pass.

    compute_dtype mirrors the kernel's MXU input precision (f32 accumulation)."""
    cdt = jnp.dtype(compute_dtype)

    def lin(h, w, b):
        return jnp.dot(h.astype(cdt), w.astype(cdt),
                       preferred_element_type=jnp.float32) + b

    h = jnp.maximum(lin(x, p["w1"], p["b1"]), 0.0)
    h = jnp.maximum(lin(h, p["w2"], p["b2"]), 0.0)
    h = jnp.maximum(lin(h, p["w3"], p["b3"]), 0.0)
    return jax.nn.sigmoid(lin(h, p["w4"], p["b4"]))


if __name__ == "__main__":
    key = jax.random.PRNGKey(0)
    k_x, k_p = jax.random.split(key)

    # Small shapes consistent with the module; batch deliberately not a
    # multiple of 8 to exercise the pad + slice path.
    batch, input_dim, hidden_dim, output_dim = 50, 16, 32, 8
    x = jax.random.normal(k_x, (batch, input_dim), jnp.float32)
    params = init_params(k_p, input_dim, hidden_dim, output_dim)

    out = baseline_forward(x, params)            # bf16 MXU inputs, f32 accum
    out = jax.block_until_ready(out)
    assert out.shape == (batch, output_dim)

    # Tight check against a reference using the same MXU input precision.
    ref_bf16 = baseline_ref(x, params, compute_dtype=jnp.bfloat16)
    assert jnp.max(jnp.abs(out - ref_bf16)) < 2e-3, "mismatch vs bf16-precision ref"

    # Looser check against the full-f32 PyTorch-equivalent forward.
    ref_f32 = baseline_ref(x, params, compute_dtype=jnp.float32)
    assert jnp.max(jnp.abs(out - ref_f32)) < 2e-2, "mismatch vs f32 reference"

    print("KERNEL_OK")
</pallas_src>

<mosaic_0001>
module attributes {stable_mosaic.version = 11 : i64} {
  func.func @_mlp_kernel(%arg0: i32, %arg1: memref<56x128xbf16, #tpu.memory_space<vmem>>, %arg2: memref<128x128xbf16, #tpu.memory_space<vmem>>, %arg3: memref<1x128xf32, #tpu.memory_space<vmem>>, %arg4: memref<128x128xbf16, #tpu.memory_space<vmem>>, %arg5: memref<1x128xf32, #tpu.memory_space<vmem>>, %arg6: memref<128x128xbf16, #tpu.memory_space<vmem>>, %arg7: memref<1x128xf32, #tpu.memory_space<vmem>>, %arg8: memref<128x128xbf16, #tpu.memory_space<vmem>>, %arg9: memref<1x128xf32, #tpu.memory_space<vmem>>, %arg10: memref<56x128xf32, #tpu.memory_space<vmem>>) attributes {dimension_semantics = [#tpu.dimension_semantics<parallel>], iteration_bounds = array<i64: 1>, scalar_prefetch = 0 : i64, scratch_operands = 0 : i64, tpu.core_type = #tpu.core_type<tc>, window_params = [{transform_indices = @transform_0, window_bounds = array<i64: 56, 128>}, {pipeline_mode = #tpu.pipeline_mode<synchronous>, transform_indices = @transform_1, window_bounds = array<i64: 128, 128>}, {pipeline_mode = #tpu.pipeline_mode<synchronous>, transform_indices = @transform_2, window_bounds = array<i64: 1, 128>}, {pipeline_mode = #tpu.pipeline_mode<synchronous>, transform_indices = @transform_3, window_bounds = array<i64: 128, 128>}, {pipeline_mode = #tpu.pipeline_mode<synchronous>, transform_indices = @transform_4, window_bounds = array<i64: 1, 128>}, {pipeline_mode = #tpu.pipeline_mode<synchronous>, transform_indices = @transform_5, window_bounds = array<i64: 128, 128>}, {pipeline_mode = #tpu.pipeline_mode<synchronous>, transform_indices = @transform_6, window_bounds = array<i64: 1, 128>}, {pipeline_mode = #tpu.pipeline_mode<synchronous>, transform_indices = @transform_7, window_bounds = array<i64: 128, 128>}, {pipeline_mode = #tpu.pipeline_mode<synchronous>, transform_indices = @transform_8, window_bounds = array<i64: 1, 128>}, {transform_indices = @transform_9, window_bounds = array<i64: 56, 128>}]} {
    %c0 = arith.constant 0 : index
    %c0_0 = arith.constant 0 : index
    %0 = vector.load %arg1[%c0, %c0_0] : memref<56x128xbf16, #tpu.memory_space<vmem>>, vector<56x128xbf16>
    %c0_1 = arith.constant 0 : index
    %c0_2 = arith.constant 0 : index
    %1 = vector.load %arg2[%c0_1, %c0_2] : memref<128x128xbf16, #tpu.memory_space<vmem>>, vector<128x128xbf16>
    %cst = arith.constant dense<0.000000e+00> : vector<56x128xf32>
    %2 = tpu.matmul %0, %1, %cst {dimension_numbers = #tpu.dot_dimension_numbers<[1], [0], [0], [1], [0, 0, 1, 1], [], []>} : vector<56x128xbf16>, vector<128x128xbf16>, vector<56x128xf32> -> vector<56x128xf32>
    %c0_3 = arith.constant 0 : index
    %c0_4 = arith.constant 0 : index
    %3 = vector.load %arg3[%c0_3, %c0_4] : memref<1x128xf32, #tpu.memory_space<vmem>>, vector<1x128xf32>
    %4 = vector.broadcast %3 : vector<1x128xf32> to vector<56x128xf32>
    %5 = arith.addf %2, %4 : vector<56x128xf32>
    %cst_5 = arith.constant 0.000000e+00 : f32
    %6 = vector.broadcast %cst_5 : f32 to vector<56x128xf32>
    %7 = arith.maximumf %5, %6 : vector<56x128xf32>
    %8 = arith.truncf %7 : vector<56x128xf32> to vector<56x128xbf16>
    %c0_6 = arith.constant 0 : index
    %c0_7 = arith.constant 0 : index
    %9 = vector.load %arg4[%c0_6, %c0_7] : memref<128x128xbf16, #tpu.memory_space<vmem>>, vector<128x128xbf16>
    %cst_8 = arith.constant dense<0.000000e+00> : vector<56x128xf32>
    %10 = tpu.matmul %8, %9, %cst_8 {dimension_numbers = #tpu.dot_dimension_numbers<[1], [0], [0], [1], [0, 0, 1, 1], [], []>} : vector<56x128xbf16>, vector<128x128xbf16>, vector<56x128xf32> -> vector<56x128xf32>
    %c0_9 = arith.constant 0 : index
    %c0_10 = arith.constant 0 : index
    %11 = vector.load %arg5[%c0_9, %c0_10] : memref<1x128xf32, #tpu.memory_space<vmem>>, vector<1x128xf32>
    %12 = vector.broadcast %11 : vector<1x128xf32> to vector<56x128xf32>
    %13 = arith.addf %10, %12 : vector<56x128xf32>
    %cst_11 = arith.constant 0.000000e+00 : f32
    %14 = vector.broadcast %cst_11 : f32 to vector<56x128xf32>
    %15 = arith.maximumf %13, %14 : vector<56x128xf32>
    %16 = arith.truncf %15 : vector<56x128xf32> to vector<56x128xbf16>
    %c0_12 = arith.constant 0 : index
    %c0_13 = arith.constant 0 : index
    %17 = vector.load %arg6[%c0_12, %c0_13] : memref<128x128xbf16, #tpu.memory_space<vmem>>, vector<128x128xbf16>
    %cst_14 = arith.constant dense<0.000000e+00> : vector<56x128xf32>
    %18 = tpu.matmul %16, %17, %cst_14 {dimension_numbers = #tpu.dot_dimension_numbers<[1], [0], [0], [1], [0, 0, 1, 1], [], []>} : vector<56x128xbf16>, vector<128x128xbf16>, vector<56x128xf32> -> vector<56x128xf32>
    %c0_15 = arith.constant 0 : index
    %c0_16 = arith.constant 0 : index
    %19 = vector.load %arg7[%c0_15, %c0_16] : memref<1x128xf32, #tpu.memory_space<vmem>>, vector<1x128xf32>
    %20 = vector.broadcast %19 : vector<1x128xf32> to vector<56x128xf32>
    %21 = arith.addf %18, %20 : vector<56x128xf32>
    %cst_17 = arith.constant 0.000000e+00 : f32
    %22 = vector.broadcast %cst_17 : f32 to vector<56x128xf32>
    %23 = arith.maximumf %21, %22 : vector<56x128xf32>
    %24 = arith.truncf %23 : vector<56x128xf32> to vector<56x128xbf16>
    %c0_18 = arith.constant 0 : index
    %c0_19 = arith.constant 0 : index
    %25 = vector.load %arg8[%c0_18, %c0_19] : memref<128x128xbf16, #tpu.memory_space<vmem>>, vector<128x128xbf16>
    %cst_20 = arith.constant dense<0.000000e+00> : vector<56x128xf32>
    %26 = tpu.matmul %24, %25, %cst_20 {dimension_numbers = #tpu.dot_dimension_numbers<[1], [0], [0], [1], [0, 0, 1, 1], [], []>} : vector<56x128xbf16>, vector<128x128xbf16>, vector<56x128xf32> -> vector<56x128xf32>
    %c0_21 = arith.constant 0 : index
    %c0_22 = arith.constant 0 : index
    %27 = vector.load %arg9[%c0_21, %c0_22] : memref<1x128xf32, #tpu.memory_space<vmem>>, vector<1x128xf32>
    %28 = vector.broadcast %27 : vector<1x128xf32> to vector<56x128xf32>
    %29 = arith.addf %26, %28 : vector<56x128xf32>
    %cst_23 = arith.constant 0.000000e+00 : f32
    %30 = vector.broadcast %cst_23 : f32 to vector<56x128xf32>
    %31 = arith.subf %30, %29 : vector<56x128xf32>
    %32 = math.exp %31 : vector<56x128xf32>
    %cst_24 = arith.constant 1.000000e+00 : f32
    %33 = vector.broadcast %cst_24 : f32 to vector<56x128xf32>
    %34 = arith.addf %33, %32 : vector<56x128xf32>
    %35 = tpu.reciprocal %34 {approx = true} : vector<56x128xf32> -> vector<56x128xf32>
    %c0_25 = arith.constant 0 : index
    %c0_26 = arith.constant 0 : index
    %36 = vector.load %arg10[%c0_25, %c0_26] : memref<56x128xf32, #tpu.memory_space<vmem>>, vector<56x128xf32>
    tpu.vector_store %arg10[%c0_25, %c0_26], %35 {strides = array<i32>} : memref<56x128xf32, #tpu.memory_space<vmem>>, vector<56x128xf32>,
    return
  }
  func.func @transform_0(%arg0: i32) -> (i32, i32) {
    %c0_i32 = arith.constant 0 : i32
    %c0_i32_0 = arith.constant 0 : i32
    return %arg0, %c0_i32 : i32, i32
  }
  func.func @transform_1(%arg0: i32) -> (i32, i32) {
    %c0_i32 = arith.constant 0 : i32
    %c0_i32_0 = arith.constant 0 : i32
    %c0_i32_1 = arith.constant 0 : i32
    return %c0_i32, %c0_i32_0 : i32, i32
  }
  func.func @transform_2(%arg0: i32) -> (i32, i32) {
    %c0_i32 = arith.constant 0 : i32
    %c0_i32_0 = arith.constant 0 : i32
    %c0_i32_1 = arith.constant 0 : i32
    return %c0_i32, %c0_i32_0 : i32, i32
  }
  func.func @transform_3(%arg0: i32) -> (i32, i32) {
    %c0_i32 = arith.constant 0 : i32
    %c0_i32_0 = arith.constant 0 : i32
    %c0_i32_1 = arith.constant 0 : i32
    return %c0_i32, %c0_i32_0 : i32, i32
  }
  func.func @transform_4(%arg0: i32) -> (i32, i32) {
    %c0_i32 = arith.constant 0 : i32
    %c0_i32_0 = arith.constant 0 : i32
    %c0_i32_1 = arith.constant 0 : i32
    return %c0_i32, %c0_i32_0 : i32, i32
  }
  func.func @transform_5(%arg0: i32) -> (i32, i32) {
    %c0_i32 = arith.constant 0 : i32
    %c0_i32_0 = arith.constant 0 : i32
    %c0_i32_1 = arith.constant 0 : i32
    return %c0_i32, %c0_i32_0 : i32, i32
  }
  func.func @transform_6(%arg0: i32) -> (i32, i32) {
    %c0_i32 = arith.constant 0 : i32
    %c0_i32_0 = arith.constant 0 : i32
    %c0_i32_1 = arith.constant 0 : i32
    return %c0_i32, %c0_i32_0 : i32, i32
  }
  func.func @transform_7(%arg0: i32) -> (i32, i32) {
    %c0_i32 = arith.constant 0 : i32
    %c0_i32_0 = arith.constant 0 : i32
    %c0_i32_1 = arith.constant 0 : i32
    return %c0_i32, %c0_i32_0 : i32, i32
  }
  func.func @transform_8(%arg0: i32) -> (i32, i32) {
    %c0_i32 = arith.constant 0 : i32
    %c0_i32_0 = arith.constant 0 : i32
    %c0_i32_1 = arith.constant 0 : i32
    return %c0_i32, %c0_i32_0 : i32, i32
  }
  func.func @transform_9(%arg0: i32) -> (i32, i32) {
    %c0_i32 = arith.constant 0 : i32
    %c0_i32_0 = arith.constant 0 : i32
    return %arg0, %c0_i32 : i32, i32
  }
}

</mosaic_0001>

<llo_original>
// kernel: baseline_forward.1
$region0: #{baseline_forward.1}
  #allocation0 [shape = 'u32[]', space=smem, size = 0x4, offset = 0x4, fixed_abs, tag = 'smem constant byte address 0x4 - core index']
  #allocation1 [shape = 'u32[72,128]{1,0:T(1,128)}', space=vmem, size = 0x9000, scoped, tag = 'internal scratch']
  %s0 = inlined_call_operand.vmem [shape: bf16[56,128], index: 0, kind: input, shape index: {}]
  %s1 = inlined_call_operand.vmem [shape: bf16[128,128], index: 1, kind: input, shape index: {}]
  %s2 = inlined_call_operand.vmem [shape: f32[1,128], index: 2, kind: input, shape index: {}]
  %s3 = inlined_call_operand.vmem [shape: bf16[128,128], index: 3, kind: input, shape index: {}]
  %s4 = inlined_call_operand.vmem [shape: f32[1,128], index: 4, kind: input, shape index: {}]
  %s5 = inlined_call_operand.vmem [shape: bf16[128,128], index: 5, kind: input, shape index: {}]
  %s6 = inlined_call_operand.vmem [shape: f32[1,128], index: 6, kind: input, shape index: {}]
  %s7 = inlined_call_operand.vmem [shape: bf16[128,128], index: 7, kind: input, shape index: {}]
  %s8 = inlined_call_operand.vmem [shape: f32[1,128], index: 8, kind: input, shape index: {}]
  %s9 = inlined_call_operand.vmem [shape: f32[56,128], index: 9, kind: output, shape index: {}]
  %s10 = sld [smem:[#allocation0]]
  $region46: #{baseline_forward.1} parent=0
    _
  %s12 = ssub.s32 1, %s10
  %s13 = scalar_select 0, %s12, %s10
  // Predicated region
  $region2: #{baseline_forward.1} parent=0 // pred_check
    _
  $region3: #{baseline_forward.1} parent=0 // pred_check_branch
    %15 = sbr.rel (0) target = $region5
  $region4: #{baseline_forward.1} parent=0 // pred_region
    _
  $region5: #{baseline_forward.1} parent=0 // pred_fallthru
    _
  // Predicated region
  $region6: #{baseline_forward.1} parent=0 // pred_check
    _
  $region7: #{baseline_forward.1} parent=0 // pred_check_branch
    %17 = sbr.rel (0) target = $region9
  $region8: #{baseline_forward.1} parent=0 // pred_region
    _
  $region9: #{baseline_forward.1} parent=0 // pred_fallthru
    _
  // Predicated region
  $region10: #{baseline_forward.1} parent=0 // pred_check
    _
  $region11: #{baseline_forward.1} parent=0 // pred_check_branch
    %19 = sbr.rel (0) target = $region13
  $region12: #{baseline_forward.1} parent=0 // pred_region
    _
  $region13: #{baseline_forward.1} parent=0 // pred_fallthru
    _
  // Predicated region
  $region14: #{baseline_forward.1} parent=0 // pred_check
    _
  $region15: #{baseline_forward.1} parent=0 // pred_check_branch
    %21 = sbr.rel (0) target = $region17
  $region16: #{baseline_forward.1} parent=0 // pred_region
    _
  $region17: #{baseline_forward.1} parent=0 // pred_fallthru
    _
  // Predicated region
  $region18: #{baseline_forward.1} parent=0 // pred_check
    _
  $region19: #{baseline_forward.1} parent=0 // pred_check_branch
    %23 = sbr.rel (0) target = $region21
  $region20: #{baseline_forward.1} parent=0 // pred_region
    _
  $region21: #{baseline_forward.1} parent=0 // pred_fallthru
    _
  // Predicated region
  $region22: #{baseline_forward.1} parent=0 // pred_check
    _
  $region23: #{baseline_forward.1} parent=0 // pred_check_branch
    %25 = sbr.rel (0) target = $region25
  $region24: #{baseline_forward.1} parent=0 // pred_region
    _
  $region25: #{baseline_forward.1} parent=0 // pred_fallthru
    _
  // Predicated region
  $region26: #{baseline_forward.1} parent=0 // pred_check
    _
  $region27: #{baseline_forward.1} parent=0 // pred_check_branch
    %27 = sbr.rel (0) target = $region29
  $region28: #{baseline_forward.1} parent=0 // pred_region
    _
  $region29: #{baseline_forward.1} parent=0 // pred_fallthru
    _
  // Predicated region
  $region30: #{baseline_forward.1} parent=0 // pred_check
    _
  $region31: #{baseline_forward.1} parent=0 // pred_check_branch
    %29 = sbr.rel (0) target = $region33
  $region32: #{baseline_forward.1} parent=0 // pred_region
    _
  $region33: #{baseline_forward.1} parent=0 // pred_fallthru
    _
  // Predicated region
  $region34: #{baseline_forward.1} parent=0 // pred_check
    _
  $region35: #{baseline_forward.1} parent=0 // pred_check_branch
    %31 = sbr.rel (0) target = $region37
  $region36: #{baseline_forward.1} parent=0 // pred_region
    _
  $region37: #{baseline_forward.1} parent=0 // pred_fallthru
    _
  %v32 = vld [vmem:[%s0] sm:$0xf]
  %v33 = vld [vmem:[%s0 + $0x4] sm:$0xf]
  %v34 = vld [vmem:[%s0 + $0x8] sm:$0xf]
  %v35 = vld [vmem:[%s0 + $0xc] sm:$0xf]
  %v36 = vld [vmem:[%s0 + $0x10] sm:$0xf]
  %v37 = vld [vmem:[%s0 + $0x14] sm:$0xf]
  %v38 = vld [vmem:[%s0 + $0x18] sm:$0xf]
  %v39 = vld [vmem:[%s1] sm:$0xf]
  %v40 = vld [vmem:[%s1 + $0x4] sm:$0xf]
  %v41 = vld [vmem:[%s1 + $0x8] sm:$0xf]
  %v42 = vld [vmem:[%s1 + $0xc] sm:$0xf]
  %v43 = vld [vmem:[%s1 + $0x10] sm:$0xf]
  %v44 = vld [vmem:[%s1 + $0x14] sm:$0xf]
  %v45 = vld [vmem:[%s1 + $0x18] sm:$0xf]
  %v46 = vld [vmem:[%s1 + $0x1c] sm:$0xf]
  %v47 = vld [vmem:[%s1 + $0x20] sm:$0xf]
  %v48 = vld [vmem:[%s1 + $0x24] sm:$0xf]
  %v49 = vld [vmem:[%s1 + $0x28] sm:$0xf]
  %v50 = vld [vmem:[%s1 + $0x2c] sm:$0xf]
  %v51 = vld [vmem:[%s1 + $0x30] sm:$0xf]
  %v52 = vld [vmem:[%s1 + $0x34] sm:$0xf]
  %v53 = vld [vmem:[%s1 + $0x38] sm:$0xf]
  %v54 = vld [vmem:[%s1 + $0x3c] sm:$0xf]
  %v55 = vld [vmem:[%s2] sm:$0x1]
  %v57 = vperm.slane %v55, 0
  %v66 = vunpack.c.l.b16 %v32
  %v67 = vunpack.c.l.b16 %v33
  %v68 = vunpack.c.l.b16 %v34
  %v69 = vunpack.c.l.b16 %v35
  %v70 = vunpack.c.l.b16 %v36
  %v71 = vunpack.c.l.b16 %v37
  %v72 = vunpack.c.l.b16 %v38
  %v73 = vpack.c.b16 %v67, %v66
  %v74 = vpack.c.b16 %v69, %v68
  %v75 = vpack.c.b16 %v71, %v70
  %v76 = vpack.c.b16 %v72, %v72
  %v97 = vunpack.c.l.b16 %v39
  %v98 = vunpack.c.l.b16 %v40
  %v99 = vunpack.c.l.b16 %v41
  %v100 = vunpack.c.l.b16 %v42
  %v101 = vunpack.c.l.b16 %v43
  %v102 = vunpack.c.l.b16 %v44
  %v103 = vunpack.c.l.b16 %v45
  %v104 = vunpack.c.l.b16 %v46
  %v105 = vunpack.c.l.b16 %v47
  %v106 = vunpack.c.l.b16 %v48
  %v107 = vunpack.c.l.b16 %v49
  %v108 = vunpack.c.l.b16 %v50
  %v109 = vunpack.c.l.b16 %v51
  %v110 = vunpack.c.l.b16 %v52
  %v111 = vunpack.c.l.b16 %v53
  %v112 = vunpack.c.l.b16 %v54
  %v113 = vpack.c.b16 %v98, %v97
  %v114 = vpack.c.b16 %v100, %v99
  %v115 = vpack.c.b16 %v102, %v101
  %v116 = vpack.c.b16 %v104, %v103
  %v117 = vpack.c.b16 %v106, %v105
  %v118 = vpack.c.b16 %v108, %v107
  %v119 = vpack.c.b16 %v110, %v109
  %v120 = vpack.c.b16 %v112, %v111
  %129 = vmatpush.bf16.msra.mxu0 %v120
  %130 = vmatpush.bf16.msra.mxu0 %v119
  %131 = vmatpush.bf16.msra.mxu0 %v118
  %132 = vmatpush.bf16.msra.mxu0 %v117
  %133 = vmatpush.bf16.msra.mxu0 %v116
  %134 = vmatpush.bf16.msra.mxu0 %v115
  %135 = vmatpush.bf16.msra.mxu0 %v114
  %136 = vmatpush.bf16.msra.mxu0 %v113
  %137 = vmatmul.bf16.gmra.mxu0 %v73
  %v138 = vpop.f32.mrf.mxu0
  %v139 = vadd.f32 %v57, %v138
  %v140 = vpop.f32.mrf.mxu0
  %v141 = vadd.f32 %v57, %v140
  %142 = vmatmul.bf16.gmra.mxu0 %v74
  %v143 = vpop.f32.mrf.mxu0
  %v144 = vadd.f32 %v57, %v143
  %v145 = vpop.f32.mrf.mxu0
  %v146 = vadd.f32 %v57, %v145
  %147 = vmatmul.bf16.gmra.mxu0 %v75
  %v148 = vpop.f32.mrf.mxu0
  %v149 = vadd.f32 %v57, %v148
  %v150 = vpop.f32.mrf.mxu0
  %v151 = vadd.f32 %v57, %v150
  %152 = vmatmul.bf16.gmra.mxu0 %v76
  %v153 = vpop.f32.mrf.mxu0
  %v154 = vadd.f32 %v57, %v153
  %v155 = vpop.f32.mrf.mxu0
  %156 = vdwg.mxu0
  %v157 = vmax.f32 %v139, 0.0
  %v158 = vmax.f32 %v141, 0.0
  %v159 = vmax.f32 %v144, 0.0
  %v160 = vmax.f32 %v146, 0.0
  %v161 = vmax.f32 %v149, 0.0
  %v162 = vmax.f32 %v151, 0.0
  %v163 = vmax.f32 %v154, 0.0
  %v164 = vpack.c.bf16 %v158, %v157
  %v165 = vpack.c.bf16 %v160, %v159
  %v166 = vpack.c.bf16 %v162, %v161
  %v167 = vpack.c.bf16 %v163, %v163
  %v168 = vld [vmem:[%s3] sm:$0xf]
  %v169 = vld [vmem:[%s3 + $0x4] sm:$0xf]
  %v170 = vld [vmem:[%s3 + $0x8] sm:$0xf]
  %v171 = vld [vmem:[%s3 + $0xc] sm:$0xf]
  %v172 = vld [vmem:[%s3 + $0x10] sm:$0xf]
  %v173 = vld [vmem:[%s3 + $0x14] sm:$0xf]
  %v174 = vld [vmem:[%s3 + $0x18] sm:$0xf]
  %v175 = vld [vmem:[%s3 + $0x1c] sm:$0xf]
  %v176 = vld [vmem:[%s3 + $0x20] sm:$0xf]
  %v177 = vld [vmem:[%s3 + $0x24] sm:$0xf]
  %v178 = vld [vmem:[%s3 + $0x28] sm:$0xf]
  %v179 = vld [vmem:[%s3 + $0x2c] sm:$0xf]
  %v180 = vld [vmem:[%s3 + $0x30] sm:$0xf]
  %v181 = vld [vmem:[%s3 + $0x34] sm:$0xf]
  %v182 = vld [vmem:[%s3 + $0x38] sm:$0xf]
  %v183 = vld [vmem:[%s3 + $0x3c] sm:$0xf]
  %v184 = vld [vmem:[%s4] sm:$0x1]
  %v186 = vperm.slane %v184, 0
  %v204 = vunpack.c.l.b16 %v168
  %v205 = vunpack.c.l.b16 %v169
  %v206 = vunpack.c.l.b16 %v170
  %v207 = vunpack.c.l.b16 %v171
  %v208 = vunpack.c.l.b16 %v172
  %v209 = vunpack.c.l.b16 %v173
  %v210 = vunpack.c.l.b16 %v174
  %v211 = vunpack.c.l.b16 %v175
  %v212 = vunpack.c.l.b16 %v176
  %v213 = vunpack.c.l.b16 %v177
  %v214 = vunpack.c.l.b16 %v178
  %v215 = vunpack.c.l.b16 %v179
  %v216 = vunpack.c.l.b16 %v180
  %v217 = vunpack.c.l.b16 %v181
  %v218 = vunpack.c.l.b16 %v182
  %v219 = vunpack.c.l.b16 %v183
  %v220 = vpack.c.b16 %v205, %v204
  %v221 = vpack.c.b16 %v207, %v206
  %v222 = vpack.c.b16 %v209, %v208
  %v223 = vpack.c.b16 %v211, %v210
  %v224 = vpack.c.b16 %v213, %v212
  %v225 = vpack.c.b16 %v215, %v214
  %v226 = vpack.c.b16 %v217, %v216
  %v227 = vpack.c.b16 %v219, %v218
  %236 = vmatpush.bf16.msra.mxu0 %v227
  %237 = vmatpush.bf16.msra.mxu0 %v226
  %238 = vmatpush.bf16.msra.mxu0 %v225
  %239 = vmatpush.bf16.msra.mxu0 %v224
  %240 = vmatpush.bf16.msra.mxu0 %v223
  %241 = vmatpush.bf16.msra.mxu0 %v222
  %242 = vmatpush.bf16.msra.mxu0 %v221
  %243 = vmatpush.bf16.msra.mxu0 %v220
  %244 = vmatmul.bf16.gmra.mxu0 %v164
  %v245 = vpop.f32.mrf.mxu0
  %v246 = vadd.f32 %v186, %v245
  %v247 = vpop.f32.mrf.mxu0
  %v248 = vadd.f32 %v186, %v247
  %249 = vmatmul.bf16.gmra.mxu0 %v165
  %v250 = vpop.f32.mrf.mxu0
  %v251 = vadd.f32 %v186, %v250
  %v252 = vpop.f32.mrf.mxu0
  %v253 = vadd.f32 %v186, %v252
  %254 = vmatmul.bf16.gmra.mxu0 %v166
  %v255 = vpop.f32.mrf.mxu0
  %v256 = vadd.f32 %v186, %v255
  %v257 = vpop.f32.mrf.mxu0
  %v258 = vadd.f32 %v186, %v257
  %259 = vmatmul.bf16.gmra.mxu0 %v167
  %v260 = vpop.f32.mrf.mxu0
  %v261 = vadd.f32 %v186, %v260
  %v262 = vpop.f32.mrf.mxu0
  %263 = vdwg.mxu0
  %v264 = vmax.f32 %v246, 0.0
  %v265 = vmax.f32 %v248, 0.0
  %v266 = vmax.f32 %v251, 0.0
  %v267 = vmax.f32 %v253, 0.0
  %v268 = vmax.f32 %v256, 0.0
  %v269 = vmax.f32 %v258, 0.0
  %v270 = vmax.f32 %v261, 0.0
  %v271 = vpack.c.bf16 %v265, %v264
  %v272 = vpack.c.bf16 %v267, %v266
  %v273 = vpack.c.bf16 %v269, %v268
  %v274 = vpack.c.bf16 %v270, %v270
  %v275 = vld [vmem:[%s5] sm:$0xf]
  %v276 = vld [vmem:[%s5 + $0x4] sm:$0xf]
  %v277 = vld [vmem:[%s5 + $0x8] sm:$0xf]
  %v278 = vld [vmem:[%s5 + $0xc] sm:$0xf]
  %v279 = vld [vmem:[%s5 + $0x10] sm:$0xf]
  %v280 = vld [vmem:[%s5 + $0x14] sm:$0xf]
  %v281 = vld [vmem:[%s5 + $0x18] sm:$0xf]
  %v282 = vld [vmem:[%s5 + $0x1c] sm:$0xf]
  %v283 = vld [vmem:[%s5 + $0x20] sm:$0xf]
  %v284 = vld [vmem:[%s5 + $0x24] sm:$0xf]
  %v285 = vld [vmem:[%s5 + $0x28] sm:$0xf]
  %v286 = vld [vmem:[%s5 + $0x2c] sm:$0xf]
  %v287 = vld [vmem:[%s5 + $0x30] sm:$0xf]
  %v288 = vld [vmem:[%s5 + $0x34] sm:$0xf]
  %v289 = vld [vmem:[%s5 + $0x38] sm:$0xf]
  %v290 = vld [vmem:[%s5 + $0x3c] sm:$0xf]
  %v291 = vld [vmem:[%s6] sm:$0x1]
  %v293 = vperm.slane %v291, 0
  %v311 = vunpack.c.l.b16 %v275
  %v312 = vunpack.c.l.b16 %v276
  %v313 = vunpack.c.l.b16 %v277
  %v314 = vunpack.c.l.b16 %v278
  %v315 = vunpack.c.l.b16 %v279
  %v316 = vunpack.c.l.b16 %v280
  %v317 = vunpack.c.l.b16 %v281
  %v318 = vunpack.c.l.b16 %v282
  %v319 = vunpack.c.l.b16 %v283
  %v320 = vunpack.c.l.b16 %v284
  %v321 = vunpack.c.l.b16 %v285
  %v322 = vunpack.c.l.b16 %v286
  %v323 = vunpack.c.l.b16 %v287
  %v324 = vunpack.c.l.b16 %v288
  %v325 = vunpack.c.l.b16 %v289
  %v326 = vunpack.c.l.b16 %v290
  %v327 = vpack.c.b16 %v312, %v311
  %v328 = vpack.c.b16 %v314, %v313
  %v329 = vpack.c.b16 %v316, %v315
  %v330 = vpack.c.b16 %v318, %v317
  %v331 = vpack.c.b16 %v320, %v319
  %v332 = vpack.c.b16 %v322, %v321
  %v333 = vpack.c.b16 %v324, %v323
  %v334 = vpack.c.b16 %v326, %v325
  %343 = vmatpush.bf16.msra.mxu0 %v334
  %344 = vmatpush.bf16.msra.mxu0 %v333
  %345 = vmatpush.bf16.msra.mxu0 %v332
  %346 = vmatpush.bf16.msra.mxu0 %v331
  %347 = vmatpush.bf16.msra.mxu0 %v330
  %348 = vmatpush.bf16.msra.mxu0 %v329
  %349 = vmatpush.bf16.msra.mxu0 %v328
  %350 = vmatpush.bf16.msra.mxu0 %v327
  %351 = vmatmul.bf16.gmra.mxu0 %v271
  %v352 = vpop.f32.mrf.mxu0
  %v353 = vadd.f32 %v293, %v352
  %v354 = vpop.f32.mrf.mxu0
  %v355 = vadd.f32 %v293, %v354
  %356 = vmatmul.bf16.gmra.mxu0 %v272
  %v357 = vpop.f32.mrf.mxu0
  %v358 = vadd.f32 %v293, %v357
  %v359 = vpop.f32.mrf.mxu0
  %v360 = vadd.f32 %v293, %v359
  %361 = vmatmul.bf16.gmra.mxu0 %v273
  %v362 = vpop.f32.mrf.mxu0
  %v363 = vadd.f32 %v293, %v362
  %v364 = vpop.f32.mrf.mxu0
  %v365 = vadd.f32 %v293, %v364
  %366 = vmatmul.bf16.gmra.mxu0 %v274
  %v367 = vpop.f32.mrf.mxu0
  %v368 = vadd.f32 %v293, %v367
  %v369 = vpop.f32.mrf.mxu0
  %370 = vdwg.mxu0
  %v371 = vmax.f32 %v353, 0.0
  %v372 = vmax.f32 %v355, 0.0
  %v373 = vmax.f32 %v358, 0.0
  %v374 = vmax.f32 %v360, 0.0
  %v375 = vmax.f32 %v363, 0.0
  %v376 = vmax.f32 %v365, 0.0
  %v377 = vmax.f32 %v368, 0.0
  %v378 = vpack.c.bf16 %v372, %v371
  %v379 = vpack.c.bf16 %v374, %v373
  %v380 = vpack.c.bf16 %v376, %v375
  %v381 = vpack.c.bf16 %v377, %v377
  %v382 = vld [vmem:[%s7] sm:$0xf]
  %v383 = vld [vmem:[%s7 + $0x4] sm:$0xf]
  %v384 = vld [vmem:[%s7 + $0x8] sm:$0xf]
  %v385 = vld [vmem:[%s7 + $0xc] sm:$0xf]
  %v386 = vld [vmem:[%s7 + $0x10] sm:$0xf]
  %v387 = vld [vmem:[%s7 + $0x14] sm:$0xf]
  %v388 = vld [vmem:[%s7 + $0x18] sm:$0xf]
  %v389 = vld [vmem:[%s7 + $0x1c] sm:$0xf]
  %v390 = vld [vmem:[%s7 + $0x20] sm:$0xf]
  %v391 = vld [vmem:[%s7 + $0x24] sm:$0xf]
  %v392 = vld [vmem:[%s7 + $0x28] sm:$0xf]
  %v393 = vld [vmem:[%s7 + $0x2c] sm:$0xf]
  %v394 = vld [vmem:[%s7 + $0x30] sm:$0xf]
  %v395 = vld [vmem:[%s7 + $0x34] sm:$0xf]
  %v396 = vld [vmem:[%s7 + $0x38] sm:$0xf]
  %v397 = vld [vmem:[%s7 + $0x3c] sm:$0xf]
  %v398 = vld [vmem:[%s8] sm:$0x1]
  %v400 = vperm.slane %v398, 0
  %v418 = vunpack.c.l.b16 %v382
  %v419 = vunpack.c.l.b16 %v383
  %v420 = vunpack.c.l.b16 %v384
  %v421 = vunpack.c.l.b16 %v385
  %v422 = vunpack.c.l.b16 %v386
  %v423 = vunpack.c.l.b16 %v387
  %v424 = vunpack.c.l.b16 %v388
  %v425 = vunpack.c.l.b16 %v389
  %v426 = vunpack.c.l.b16 %v390
  %v427 = vunpack.c.l.b16 %v391
  %v428 = vunpack.c.l.b16 %v392
  %v429 = vunpack.c.l.b16 %v393
  %v430 = vunpack.c.l.b16 %v394
  %v431 = vunpack.c.l.b16 %v395
  %v432 = vunpack.c.l.b16 %v396
  %v433 = vunpack.c.l.b16 %v397
  %v434 = vpack.c.b16 %v419, %v418
  %v435 = vpack.c.b16 %v421, %v420
  %v436 = vpack.c.b16 %v423, %v422
  %v437 = vpack.c.b16 %v425, %v424
  %v438 = vpack.c.b16 %v427, %v426
  %v439 = vpack.c.b16 %v429, %v428
  %v440 = vpack.c.b16 %v431, %v430
  %v441 = vpack.c.b16 %v433, %v432
  %450 = vmatpush.bf16.msra.mxu0 %v441
  %451 = vmatpush.bf16.msra.mxu0 %v440
  %452 = vmatpush.bf16.msra.mxu0 %v439
  %453 = vmatpush.bf16.msra.mxu0 %v438
  %454 = vmatpush.bf16.msra.mxu0 %v437
  %455 = vmatpush.bf16.msra.mxu0 %v436
  %456 = vmatpush.bf16.msra.mxu0 %v435
  %457 = vmatpush.bf16.msra.mxu0 %v434
  %458 = vmatmul.bf16.gmra.mxu0 %v378
  %v459 = vpop.f32.mrf.mxu0
  %v460 = vadd.f32 %v400, %v459
  %v461 = vpop.f32.mrf.mxu0
  %v462 = vadd.f32 %v400, %v461
  %463 = vmatmul.bf16.gmra.mxu0 %v379
  %v464 = vpop.f32.mrf.mxu0
  %v465 = vadd.f32 %v400, %v464
  %v466 = vpop.f32.mrf.mxu0
  %v467 = vadd.f32 %v400, %v466
  %468 = vmatmul.bf16.gmra.mxu0 %v380
  %v469 = vpop.f32.mrf.mxu0
  %v470 = vadd.f32 %v400, %v469
  %v471 = vpop.f32.mrf.mxu0
  %v472 = vadd.f32 %v400, %v471
  %473 = vmatmul.bf16.gmra.mxu0 %v381
  %v474 = vpop.f32.mrf.mxu0
  %v475 = vadd.f32 %v400, %v474
  %v476 = vpop.f32.mrf.mxu0
  %477 = vdwg.mxu0
  %v478 = vsub.f32 0.0, %v460
  %v479 = vsub.f32 0.0, %v462
  %v480 = vsub.f32 0.0, %v465
  %v481 = vsub.f32 0.0, %v467
  %v482 = vsub.f32 0.0, %v470
  %v483 = vsub.f32 0.0, %v472
  %v484 = vsub.f32 0.0, %v475
  %v485 = vmul.f32 %v478, 1.442695
  %v486 = vpow.pop %v485
  %v487 = vmul.f32 %v479, 1.442695
  %v488 = vpow.pop %v487
  %v489 = vmul.f32 %v480, 1.442695
  %v490 = vpow.pop %v489
  %v491 = vmul.f32 %v481, 1.442695
  %v492 = vpow.pop %v491
  %v493 = vmul.f32 %v482, 1.442695
  %v494 = vpow.pop %v493
  %v495 = vmul.f32 %v483, 1.442695
  %v496 = vpow.pop %v495
  %v497 = vmul.f32 %v484, 1.442695
  %v498 = vpow.pop %v497
  %v499 = vadd.f32 %v486, 1.0
  %v500 = vadd.f32 %v488, 1.0
  %v501 = vadd.f32 %v490, 1.0
  %v502 = vadd.f32 %v492, 1.0
  %v503 = vadd.f32 %v494, 1.0
  %v504 = vadd.f32 %v496, 1.0
  %v505 = vadd.f32 %v498, 1.0
  %v506 = vrcp.pop %v499
  %v507 = vrcp.pop %v500
  %v508 = vrcp.pop %v501
  %v509 = vrcp.pop %v502
  %v510 = vrcp.pop %v503
  %v511 = vrcp.pop %v504
  %v512 = vrcp.pop %v505
  %513 = vst [vmem:[%s9] sm:$0xff] %v506
  %514 = vst [vmem:[%s9 + $0x8] sm:$0xff] %v507
  %515 = vst [vmem:[%s9 + $0x10] sm:$0xff] %v508
  %516 = vst [vmem:[%s9 + $0x18] sm:$0xff] %v509
  %517 = vst [vmem:[%s9 + $0x20] sm:$0xff] %v510
  %518 = vst [vmem:[%s9 + $0x28] sm:$0xff] %v511
  %519 = vst [vmem:[%s9 + $0x30] sm:$0xff] %v512
  // Predicated region
  $region38: #{baseline_forward.1} parent=0 // pred_check
    _
  $region39: #{baseline_forward.1} parent=0 // pred_check_branch
    %521 = sbr.rel (0) target = $region41
  $region40: #{baseline_forward.1} parent=0 // pred_region
    _
  $region41: #{baseline_forward.1} parent=0 // pred_fallthru
    _
  // Predicated region
  $region42: #{baseline_forward.1} parent=0 // pred_check
    _
  $region43: #{baseline_forward.1} parent=0 // pred_check_branch
    %523 = sbr.rel (0) target = $region45
  $region44: #{baseline_forward.1} parent=0 // pred_region
    _
  $region45: #{baseline_forward.1} parent=0 // pred_fallthru
    _

</llo_original>
